<compile_context>
chip_gen: v7x
topology: tpu7x:2x2x1
jax: 0.10.0
libtpu: 0.0.40
codegen_flags: <defaults>
</compile_context>

<pallas_src>
import jax
import jax.numpy as jnp
from jax.experimental import pallas as pl
from jax.experimental.pallas import tpu as pltpu


def dqn_kernel(x_ref, w1_ref, b1_ref, w2_ref, b2_ref, w3_ref, b3_ref, o_ref):
    # fc1 + ReLU  (bf16 operands, f32 accumulate; bias/ReLU in f32, then narrow)
    x = x_ref[...].astype(jnp.bfloat16)
    h1 = jnp.dot(x, w1_ref[...], preferred_element_type=jnp.float32)
    h1 = jnp.maximum(h1 + b1_ref[...], 0.0).astype(jnp.bfloat16)
    # fc2 + ReLU
    h2 = jnp.dot(h1, w2_ref[...], preferred_element_type=jnp.float32)
    h2 = jnp.maximum(h2 + b2_ref[...], 0.0).astype(jnp.bfloat16)
    # fc3 (no activation); narrow (out_dim-lane) store, masked vst is cheap vs DMA
    out = jnp.dot(h2, w3_ref[...], preferred_element_type=jnp.float32)
    o_ref[...] = (out + b3_ref[...]).astype(o_ref.dtype)


def _round_up(x, m):
    return ((x + m - 1) // m) * m


def dqn_forward(x, params, *, tb=2048):
    """x: (B, input_dim) f32.  params: dict of w1,b1,w2,b2,w3,b3 (f32, PyTorch layout
    transposed to (D_in, D_out)).  tb: max batch tile (multiple of 8)."""
    w1, b1, w2, b2, w3, b3 = (params[k] for k in ("w1", "b1", "w2", "b2", "w3", "b3"))
    B, in_dim = x.shape
    hid1, hid2 = w1.shape[1], w2.shape[1]
    out_dim = w3.shape[1]

    # bf16 HBM storage for weights (halves weight DMA; f32 accumulate in-kernel).
    w1b = w1.astype(jnp.bfloat16)
    w2b = w2.astype(jnp.bfloat16)
    w3b = w3.astype(jnp.bfloat16)

    # Batch tile: multiple of 8 sublanes, capped at tb.  If one block would cover the
    # whole batch, split it in two so the "parallel" grid axis feeds both v7x TCs.
    tb = max(8, _round_up(tb, 8))
    TB = min(tb, _round_up(B, 8))
    if pl.cdiv(B, TB) == 1 and B >= 128:
        TB = _round_up(pl.cdiv(B, 2), 8)
    n_blocks = pl.cdiv(B, TB)  # last block may be partial; Pallas masks OOB writes

    # VMEM budget: double-buffered x/out blocks + resident weights/biases + h1/h2.
    w_bytes = (w1b.size + w2b.size + w3b.size) * 2 + (b1.size + b2.size + b3.size) * 4
    budget = (2 * TB * in_dim * 4            # x double-buffer
              + 2 * TB * out_dim * 4         # out double-buffer
              + TB * (hid1 + hid2) * (4 + 2)  # h1/h2 f32 + bf16 copies
              + 2 * w_bytes)                 # weights/biases (worst-case 2 bufs)
    vmem_limit = int(min(max(2 * budget + (2 << 20), 8 << 20), 32 << 20))

    resident = lambda shape: pl.BlockSpec(shape, lambda i: (0, 0))

    out = pl.pallas_call(
        dqn_kernel,
        out_shape=jax.ShapeDtypeStruct((B, out_dim), jnp.float32),
        grid_spec=pl.GridSpec(
            grid=(n_blocks,),
            in_specs=[
                pl.BlockSpec((TB, in_dim), lambda i: (i, 0)),   # x streams per step
                resident(w1b.shape), resident(b1.shape),        # weights/biases stay
                resident(w2b.shape), resident(b2.shape),        # resident in VMEM
                resident(w3b.shape), resident(b3.shape),
            ],
            # out_dim equals the full last dim -> legal, lane-narrow but un-padded.
            out_specs=pl.BlockSpec((TB, out_dim), lambda i: (i, 0)),
        ),
        compiler_params=pltpu.CompilerParams(
            dimension_semantics=("parallel",),                  # shard batch on v7x TCs
            vmem_limit_bytes=vmem_limit),
    )(x, w1b, b1, w2b, b2, w3b, b3)

    return out


def init_params(key, input_dim, output_dim):
    """Deterministic init matching PyTorch nn.Linear default U(-1/sqrt(fan_in), ...)."""
    dims = [(input_dim, 128), (128, 64), (64, output_dim)]
    params = {}
    keys = jax.random.split(key, 2 * len(dims))
    for idx, (fan_in, fan_out) in enumerate(dims):
        bound = 1.0 / jnp.sqrt(float(fan_in))
        params[f"w{idx + 1}"] = jax.random.uniform(
            keys[2 * idx], (fan_in, fan_out),
            minval=-bound, maxval=bound, dtype=jnp.float32)
        params[f"b{idx + 1}"] = jax.random.uniform(
            keys[2 * idx + 1], (1, fan_out),
            minval=-bound, maxval=bound, dtype=jnp.float32)
    return params


def ref_forward_bf16(x, params):
    """Pure-JAX reference mirroring the kernel's precision (bf16 operands, f32 acc)."""
    bf = jnp.bfloat16
    h1 = jnp.maximum(
        jnp.dot(x.astype(bf), params["w1"].astype(bf),
                preferred_element_type=jnp.float32) + params["b1"], 0.0).astype(bf)
    h2 = jnp.maximum(
        jnp.dot(h1, params["w2"].astype(bf),
                preferred_element_type=jnp.float32) + params["b2"], 0.0).astype(bf)
    return jnp.dot(h2, params["w3"].astype(bf),
                   preferred_element_type=jnp.float32) + params["b3"]


if __name__ == "__main__":
    # TODO(synk): DQN.save_model (torch.save) is host-side I/O with no kernel equivalent.
    key = jax.random.PRNGKey(0)
    k_x, k_p = jax.random.split(key)

    # Small demo shapes; batch=260 exercises the even 2-block split (default tb) and,
    # with tb=128, the multi-block + ragged (partial last block) path.
    batch, input_dim, output_dim = 260, 16, 4
    x = jax.random.normal(k_x, (batch, input_dim), dtype=jnp.float32)
    params = init_params(k_p, input_dim, output_dim)

    # Full-f32 reference for loose sanity check.
    h1 = jnp.maximum(x @ params["w1"] + params["b1"], 0.0)
    h2 = jnp.maximum(h1 @ params["w2"] + params["b2"], 0.0)
    ref_f32 = h2 @ params["w3"] + params["b3"]
    # Precision-matched (bf16 operands, f32 accumulate) reference.
    ref_bf = ref_forward_bf16(x, params)

    for tb in (2048, 128):   # default split path, then multi-block + partial tile
        out = dqn_forward(x, params, tb=tb)
        out = jax.block_until_ready(out)
        assert out.shape == (batch, output_dim)
        assert jnp.allclose(out, ref_bf, atol=2e-3, rtol=2e-3), \
            f"mismatch vs bf16 reference (tb={tb})"
        assert jnp.allclose(out, ref_f32, atol=5e-2, rtol=5e-2), \
            f"mismatch vs f32 reference (tb={tb})"

    print("KERNEL_OK")
</pallas_src>

<mosaic_0001>
module attributes {stable_mosaic.version = 11 : i64} {
  func.func @dqn_kernel(%arg0: i32, %arg1: memref<136x16xf32, #tpu.memory_space<vmem>>, %arg2: memref<16x128xbf16, #tpu.memory_space<vmem>>, %arg3: memref<1x128xf32, #tpu.memory_space<vmem>>, %arg4: memref<128x64xbf16, #tpu.memory_space<vmem>>, %arg5: memref<1x64xf32, #tpu.memory_space<vmem>>, %arg6: memref<64x4xbf16, #tpu.memory_space<vmem>>, %arg7: memref<1x4xf32, #tpu.memory_space<vmem>>, %arg8: memref<136x4xf32, #tpu.memory_space<vmem>>) attributes {dimension_semantics = [#tpu.dimension_semantics<parallel>], iteration_bounds = array<i64: 2>, scalar_prefetch = 0 : i64, scratch_operands = 0 : i64, tpu.core_type = #tpu.core_type<tc>, window_params = [{transform_indices = @transform_0, window_bounds = array<i64: 136, 16>}, {pipeline_mode = #tpu.pipeline_mode<synchronous>, transform_indices = @transform_1, window_bounds = array<i64: 16, 128>}, {pipeline_mode = #tpu.pipeline_mode<synchronous>, transform_indices = @transform_2, window_bounds = array<i64: 1, 128>}, {pipeline_mode = #tpu.pipeline_mode<synchronous>, transform_indices = @transform_3, window_bounds = array<i64: 128, 64>}, {pipeline_mode = #tpu.pipeline_mode<synchronous>, transform_indices = @transform_4, window_bounds = array<i64: 1, 64>}, {pipeline_mode = #tpu.pipeline_mode<synchronous>, transform_indices = @transform_5, window_bounds = array<i64: 64, 4>}, {pipeline_mode = #tpu.pipeline_mode<synchronous>, transform_indices = @transform_6, window_bounds = array<i64: 1, 4>}, {transform_indices = @transform_7, window_bounds = array<i64: 136, 4>}]} {
    %c0 = arith.constant 0 : index
    %c0_0 = arith.constant 0 : index
    %0 = vector.load %arg1[%c0, %c0_0] : memref<136x16xf32, #tpu.memory_space<vmem>>, vector<136x16xf32>
    %1 = arith.truncf %0 : vector<136x16xf32> to vector<136x16xbf16>
    %c0_1 = arith.constant 0 : index
    %c0_2 = arith.constant 0 : index
    %2 = vector.load %arg2[%c0_1, %c0_2] : memref<16x128xbf16, #tpu.memory_space<vmem>>, vector<16x128xbf16>
    %cst = arith.constant dense<0.000000e+00> : vector<136x128xf32>
    %3 = tpu.matmul %1, %2, %cst {dimension_numbers = #tpu.dot_dimension_numbers<[1], [0], [0], [1], [0, 0, 1, 1], [], []>} : vector<136x16xbf16>, vector<16x128xbf16>, vector<136x128xf32> -> vector<136x128xf32>
    %c0_3 = arith.constant 0 : index
    %c0_4 = arith.constant 0 : index
    %4 = vector.load %arg3[%c0_3, %c0_4] : memref<1x128xf32, #tpu.memory_space<vmem>>, vector<1x128xf32>
    %5 = vector.broadcast %4 : vector<1x128xf32> to vector<136x128xf32>
    %6 = arith.addf %3, %5 : vector<136x128xf32>
    %cst_5 = arith.constant 0.000000e+00 : f32
    %7 = vector.broadcast %cst_5 : f32 to vector<136x128xf32>
    %8 = arith.maximumf %6, %7 : vector<136x128xf32>
    %9 = arith.truncf %8 : vector<136x128xf32> to vector<136x128xbf16>
    %c0_6 = arith.constant 0 : index
    %c0_7 = arith.constant 0 : index
    %10 = vector.load %arg4[%c0_6, %c0_7] : memref<128x64xbf16, #tpu.memory_space<vmem>>, vector<128x64xbf16>
    %cst_8 = arith.constant dense<0.000000e+00> : vector<136x64xf32>
    %11 = tpu.matmul %9, %10, %cst_8 {dimension_numbers = #tpu.dot_dimension_numbers<[1], [0], [0], [1], [0, 0, 1, 1], [], []>} : vector<136x128xbf16>, vector<128x64xbf16>, vector<136x64xf32> -> vector<136x64xf32>
    %c0_9 = arith.constant 0 : index
    %c0_10 = arith.constant 0 : index
    %12 = vector.load %arg5[%c0_9, %c0_10] : memref<1x64xf32, #tpu.memory_space<vmem>>, vector<1x64xf32>
    %13 = vector.broadcast %12 : vector<1x64xf32> to vector<136x64xf32>
    %14 = arith.addf %11, %13 : vector<136x64xf32>
    %cst_11 = arith.constant 0.000000e+00 : f32
    %15 = vector.broadcast %cst_11 : f32 to vector<136x64xf32>
    %16 = arith.maximumf %14, %15 : vector<136x64xf32>
    %17 = arith.truncf %16 : vector<136x64xf32> to vector<136x64xbf16>
    %c0_12 = arith.constant 0 : index
    %c0_13 = arith.constant 0 : index
    %18 = vector.load %arg6[%c0_12, %c0_13] : memref<64x4xbf16, #tpu.memory_space<vmem>>, vector<64x4xbf16>
    %cst_14 = arith.constant dense<0.000000e+00> : vector<136x4xf32>
    %19 = tpu.matmul %17, %18, %cst_14 {dimension_numbers = #tpu.dot_dimension_numbers<[1], [0], [0], [1], [0, 0, 1, 1], [], []>} : vector<136x64xbf16>, vector<64x4xbf16>, vector<136x4xf32> -> vector<136x4xf32>
    %c0_15 = arith.constant 0 : index
    %c0_16 = arith.constant 0 : index
    %20 = vector.load %arg7[%c0_15, %c0_16] : memref<1x4xf32, #tpu.memory_space<vmem>>, vector<1x4xf32>
    %21 = vector.broadcast %20 : vector<1x4xf32> to vector<136x4xf32>
    %22 = arith.addf %19, %21 : vector<136x4xf32>
    %c0_17 = arith.constant 0 : index
    %c0_18 = arith.constant 0 : index
    %23 = vector.load %arg8[%c0_17, %c0_18] : memref<136x4xf32, #tpu.memory_space<vmem>>, vector<136x4xf32>
    tpu.vector_store %arg8[%c0_17, %c0_18], %22 {strides = array<i32>} : memref<136x4xf32, #tpu.memory_space<vmem>>, vector<136x4xf32>,
    return
  }
  func.func @transform_0(%arg0: i32) -> (i32, i32) {
    %c0_i32 = arith.constant 0 : i32
    %c0_i32_0 = arith.constant 0 : i32
    return %arg0, %c0_i32 : i32, i32
  }
  func.func @transform_1(%arg0: i32) -> (i32, i32) {
    %c0_i32 = arith.constant 0 : i32
    %c0_i32_0 = arith.constant 0 : i32
    %c0_i32_1 = arith.constant 0 : i32
    return %c0_i32, %c0_i32_0 : i32, i32
  }
  func.func @transform_2(%arg0: i32) -> (i32, i32) {
    %c0_i32 = arith.constant 0 : i32
    %c0_i32_0 = arith.constant 0 : i32
    %c0_i32_1 = arith.constant 0 : i32
    return %c0_i32, %c0_i32_0 : i32, i32
  }
  func.func @transform_3(%arg0: i32) -> (i32, i32) {
    %c0_i32 = arith.constant 0 : i32
    %c0_i32_0 = arith.constant 0 : i32
    %c0_i32_1 = arith.constant 0 : i32
    return %c0_i32, %c0_i32_0 : i32, i32
  }
  func.func @transform_4(%arg0: i32) -> (i32, i32) {
    %c0_i32 = arith.constant 0 : i32
    %c0_i32_0 = arith.constant 0 : i32
    %c0_i32_1 = arith.constant 0 : i32
    return %c0_i32, %c0_i32_0 : i32, i32
  }
  func.func @transform_5(%arg0: i32) -> (i32, i32) {
    %c0_i32 = arith.constant 0 : i32
    %c0_i32_0 = arith.constant 0 : i32
    %c0_i32_1 = arith.constant 0 : i32
    return %c0_i32, %c0_i32_0 : i32, i32
  }
  func.func @transform_6(%arg0: i32) -> (i32, i32) {
    %c0_i32 = arith.constant 0 : i32
    %c0_i32_0 = arith.constant 0 : i32
    %c0_i32_1 = arith.constant 0 : i32
    return %c0_i32, %c0_i32_0 : i32, i32
  }
  func.func @transform_7(%arg0: i32) -> (i32, i32) {
    %c0_i32 = arith.constant 0 : i32
    %c0_i32_0 = arith.constant 0 : i32
    return %arg0, %c0_i32 : i32, i32
  }
}

</mosaic_0001>

<llo_original>
// kernel: tpu_custom_call.1
$region0: #{tpu_custom_call.1}
  #allocation0 [shape = 'u32[]', space=smem, size = 0x4, offset = 0x4, fixed_abs, tag = 'smem constant byte address 0x4 - core index']
  #allocation1 [shape = 'u32[144,128]{1,0:T(1,128)}', space=vmem, size = 0x12000, scoped, tag = 'internal scratch']
  %s0 = inlined_call_operand.vmem [shape: f32[260,16], index: 0, kind: input, shape index: {}]
  %s1 = inlined_call_operand.vmem [shape: bf16[16,128], index: 1, kind: input, shape index: {}]
  %s2 = inlined_call_operand.vmem [shape: f32[1,128], index: 2, kind: input, shape index: {}]
  %s3 = inlined_call_operand.vmem [shape: bf16[128,64], index: 3, kind: input, shape index: {}]
  %s4 = inlined_call_operand.vmem [shape: f32[1,64], index: 4, kind: input, shape index: {}]
  %s5 = inlined_call_operand.vmem [shape: bf16[64,4], index: 5, kind: input, shape index: {}]
  %s6 = inlined_call_operand.vmem [shape: f32[1,4], index: 6, kind: input, shape index: {}]
  %s7 = inlined_call_operand.vmem [shape: f32[260,4], index: 7, kind: output, shape index: {}]
  %s8 = sld [smem:[#allocation0]]
  $region109: #{tpu_custom_call.1} parent=0
    _
  %s10 = ssub.s32 1, %s8
  %s11 = scalar_select 0, %s10, %s8
  $region1: #{tpu_custom_call.1} parent=0
    #allocation2 [shape = 'u8[139264]{0}', space=vmem, size = 0x22000, scoped, tag = 'output window, operand 0']
    loop: start=0, step=1, limit=4
    $region2: #{tpu_custom_call.1} parent=1 // loop_pre_header
      _
    $region3: #{tpu_custom_call.1} parent=1 // loop_header
      %s13 = sphi 0, %s17
      %p14 = scmp.ge.s32.totalorder %s13, 4
      %s23 = sphi 0, %s25
      %s26 = sphi 0, %s23
      %s27 = sphi 0, %s26
      %s43 = sphi 0, %s27
      %s47 = sphi 0, %s47
      %s49 = sphi 0, %s47
      %s50 = sphi 0, %s49
      %s64 = sphi 0, %s50
      %s68 = sphi 0, %s68
      %s70 = sphi 0, %s68
      %s71 = sphi 0, %s70
      %s85 = sphi 0, %s71
      %s89 = sphi 0, %s89
      %s91 = sphi 0, %s89
      %s92 = sphi 0, %s91
      %s106 = sphi 0, %s92
      %s110 = sphi 0, %s110
      %s112 = sphi 0, %s110
      %s113 = sphi 0, %s112
      %s127 = sphi 0, %s113
      %s131 = sphi 0, %s131
      %s133 = sphi 0, %s131
      %s134 = sphi 0, %s133
      %s148 = sphi 0, %s134
      %s152 = sphi 0, %s152
      %s154 = sphi 0, %s152
      %s155 = sphi 0, %s154
      %s169 = sphi 0, %s155
      %s175 = sphi 0, %s177
      %s178 = sphi 0, %s175
      %s179 = sphi 0, %s178
      %s195 = sphi 0, %s179
    $region4: #{tpu_custom_call.1} parent=1 // loop_header_branch
      %16 = sbr.rel (%p14) target = $region8
    $region5: #{tpu_custom_call.1} parent=1 // loop_body
      %s18 = ssub.s32 %s13, 1
      %s19 = ssub.s32 %s13, 2
      %s20 = sadd.s32 %s13, 1
      %s21 = ssub.s32 %s13, %s20
      %p22 = scmp.eq.s32.totalorder %s21, 0
      %s24 = sadd.s32 %s23, 1
      %s25 = scalar_select %p22, %s23, %s24
      %p28 = pneg %p22
      %p29 = scmp.eq.s32.totalorder %s13, 1
      %p30 = por %p28, %p29
      %p31 = scmp.ne.s32.totalorder %s23, %s26
      %p32 = scmp.eq.s32.totalorder %s13, 0
      %p33 = por %p31, %p32
      %p34 = scmp.ne.s32.totalorder %s23, %s26
      %p35 = scmp.eq.s32.totalorder %s18, 1
      %p36 = por %p34, %p35
      %p37 = scmp.ne.s32.totalorder %s26, %s27
      %p38 = scmp.eq.s32.totalorder %s18, 0
      %p39 = por %p37, %p38
      %p40 = scmp.ne.s32.totalorder %s26, %s27
      %p41 = scmp.eq.s32.totalorder %s19, 1
      %p42 = por %p40, %p41
      %p44 = scmp.ne.s32.totalorder %s27, %s43
      %p45 = scmp.eq.s32.totalorder %s19, 0
      %p46 = por %p44, %p45
      %s48 = sadd.s32 %s47, 1
      %p51 = scmp.eq.s32.totalorder %s13, 1
      %p52 = scmp.ne.s32.totalorder %s47, %s49
      %p53 = scmp.eq.s32.totalorder %s13, 0
      %p54 = por %p52, %p53
      %p55 = scmp.ne.s32.totalorder %s47, %s49
      %p56 = scmp.eq.s32.totalorder %s18, 1
      %p57 = por %p55, %p56
      %p58 = scmp.ne.s32.totalorder %s49, %s50
      %p59 = scmp.eq.s32.totalorder %s18, 0
      %p60 = por %p58, %p59
      %p61 = scmp.ne.s32.totalorder %s49, %s50
      %p62 = scmp.eq.s32.totalorder %s19, 1
      %p63 = por %p61, %p62
      %p65 = scmp.ne.s32.totalorder %s50, %s64
      %p66 = scmp.eq.s32.totalorder %s19, 0
      %p67 = por %p65, %p66
      %s69 = sadd.s32 %s68, 1
      %p72 = scmp.eq.s32.totalorder %s13, 1
      %p73 = scmp.ne.s32.totalorder %s68, %s70
      %p74 = scmp.eq.s32.totalorder %s13, 0
      %p75 = por %p73, %p74
      %p76 = scmp.ne.s32.totalorder %s68, %s70
      %p77 = scmp.eq.s32.totalorder %s18, 1
      %p78 = por %p76, %p77
      %p79 = scmp.ne.s32.totalorder %s70, %s71
      %p80 = scmp.eq.s32.totalorder %s18, 0
      %p81 = por %p79, %p80
      %p82 = scmp.ne.s32.totalorder %s70, %s71
      %p83 = scmp.eq.s32.totalorder %s19, 1
      %p84 = por %p82, %p83
      %p86 = scmp.ne.s32.totalorder %s71, %s85
      %p87 = scmp.eq.s32.totalorder %s19, 0
      %p88 = por %p86, %p87
      %s90 = sadd.s32 %s89, 1
      %p93 = scmp.eq.s32.totalorder %s13, 1
      %p94 = scmp.ne.s32.totalorder %s89, %s91
      %p95 = scmp.eq.s32.totalorder %s13, 0
      %p96 = por %p94, %p95
      %p97 = scmp.ne.s32.totalorder %s89, %s91
      %p98 = scmp.eq.s32.totalorder %s18, 1
      %p99 = por %p97, %p98
      %p100 = scmp.ne.s32.totalorder %s91, %s92
      %p101 = scmp.eq.s32.totalorder %s18, 0
      %p102 = por %p100, %p101
      %p103 = scmp.ne.s32.totalorder %s91, %s92
      %p104 = scmp.eq.s32.totalorder %s19, 1
      %p105 = por %p103, %p104
      %p107 = scmp.ne.s32.totalorder %s92, %s106
      %p108 = scmp.eq.s32.totalorder %s19, 0
      %p109 = por %p107, %p108
      %s111 = sadd.s32 %s110, 1
      %p114 = scmp.eq.s32.totalorder %s13, 1
      %p115 = scmp.ne.s32.totalorder %s110, %s112
      %p116 = scmp.eq.s32.totalorder %s13, 0
      %p117 = por %p115, %p116
      %p118 = scmp.ne.s32.totalorder %s110, %s112
      %p119 = scmp.eq.s32.totalorder %s18, 1
      %p120 = por %p118, %p119
      %p121 = scmp.ne.s32.totalorder %s112, %s113
      %p122 = scmp.eq.s32.totalorder %s18, 0
      %p123 = por %p121, %p122
      %p124 = scmp.ne.s32.totalorder %s112, %s113
      %p125 = scmp.eq.s32.totalorder %s19, 1
      %p126 = por %p124, %p125
      %p128 = scmp.ne.s32.totalorder %s113, %s127
      %p129 = scmp.eq.s32.totalorder %s19, 0
      %p130 = por %p128, %p129
      %s132 = sadd.s32 %s131, 1
      %p135 = scmp.eq.s32.totalorder %s13, 1
      %p136 = scmp.ne.s32.totalorder %s131, %s133
      %p137 = scmp.eq.s32.totalorder %s13, 0
      %p138 = por %p136, %p137
      %p139 = scmp.ne.s32.totalorder %s131, %s133
      %p140 = scmp.eq.s32.totalorder %s18, 1
      %p141 = por %p139, %p140
      %p142 = scmp.ne.s32.totalorder %s133, %s134
      %p143 = scmp.eq.s32.totalorder %s18, 0
      %p144 = por %p142, %p143
      %p145 = scmp.ne.s32.totalorder %s133, %s134
      %p146 = scmp.eq.s32.totalorder %s19, 1
      %p147 = por %p145, %p146
      %p149 = scmp.ne.s32.totalorder %s134, %s148
      %p150 = scmp.eq.s32.totalorder %s19, 0
      %p151 = por %p149, %p150
      %s153 = sadd.s32 %s152, 1
      %p156 = scmp.eq.s32.totalorder %s13, 1
      %p157 = scmp.ne.s32.totalorder %s152, %s154
      %p158 = scmp.eq.s32.totalorder %s13, 0
      %p159 = por %p157, %p158
      %p160 = scmp.ne.s32.totalorder %s152, %s154
      %p161 = scmp.eq.s32.totalorder %s18, 1
      %p162 = por %p160, %p161
      %p163 = scmp.ne.s32.totalorder %s154, %s155
      %p164 = scmp.eq.s32.totalorder %s18, 0
      %p165 = por %p163, %p164
      %p166 = scmp.ne.s32.totalorder %s154, %s155
      %p167 = scmp.eq.s32.totalorder %s19, 1
      %p168 = por %p166, %p167
      %p170 = scmp.ne.s32.totalorder %s155, %s169
      %p171 = scmp.eq.s32.totalorder %s19, 0
      %p172 = por %p170, %p171
      %s173 = ssub.s32 %s13, %s20
      %p174 = scmp.eq.s32.totalorder %s173, 0
      %s176 = sadd.s32 %s175, 1
      %s177 = scalar_select %p174, %s175, %s176
      %p180 = pneg %p174
      %p181 = scmp.eq.s32.totalorder %s13, 1
      %p182 = por %p180, %p181
      %p183 = scmp.ne.s32.totalorder %s175, %s178
      %p184 = scmp.eq.s32.totalorder %s13, 0
      %p185 = por %p183, %p184
      %p186 = scmp.ne.s32.totalorder %s175, %s178
      %p187 = scmp.eq.s32.totalorder %s18, 1
      %p188 = por %p186, %p187
      %p189 = scmp.ne.s32.totalorder %s178, %s179
      %p190 = scmp.eq.s32.totalorder %s18, 0
      %p191 = por %p189, %p190
      %p192 = scmp.ne.s32.totalorder %s178, %s179
      %p193 = scmp.eq.s32.totalorder %s19, 1
      %p194 = por %p192, %p193
      %p196 = scmp.ne.s32.totalorder %s179, %s195
      %p197 = scmp.eq.s32.totalorder %s19, 0
      %p198 = por %p196, %p197
      %p199 = scmp.le.s32.totalorder 1, %s13
      %p200 = scmp.lt.s32.totalorder %s13, 3
      %p201 = pnand %p199, %p200
      %p202 = pneg %p201
      // Predicated region
      $region9: #{tpu_custom_call.1} parent=5 // pred_check
        _
      $region10: #{tpu_custom_call.1} parent=5 // pred_check_branch
        %204 = sbr.rel (%p201) target = $region12
      $region11: #{tpu_custom_call.1} parent=5 // pred_region
        %s205 = ssub.s32 %s13, 1
        // Predicated region
        $region13: #{tpu_custom_call.1} parent=11 // pred_check
          %p206 = pneg %p60
        $region14: #{tpu_custom_call.1} parent=11 // pred_check_branch
          %208 = sbr.rel (%p206) target = $region16
        $region15: #{tpu_custom_call.1} parent=11 // pred_region
          _
        $region16: #{tpu_custom_call.1} parent=11 // pred_fallthru
          _
        // Predicated region
        $region17: #{tpu_custom_call.1} parent=11 // pred_check
          %p209 = pneg %p81
        $region18: #{tpu_custom_call.1} parent=11 // pred_check_branch
          %211 = sbr.rel (%p209) target = $region20
        $region19: #{tpu_custom_call.1} parent=11 // pred_region
          _
        $region20: #{tpu_custom_call.1} parent=11 // pred_fallthru
          _
        // Predicated region
        $region21: #{tpu_custom_call.1} parent=11 // pred_check
          %p212 = pneg %p102
        $region22: #{tpu_custom_call.1} parent=11 // pred_check_branch
          %214 = sbr.rel (%p212) target = $region24
        $region23: #{tpu_custom_call.1} parent=11 // pred_region
          _
        $region24: #{tpu_custom_call.1} parent=11 // pred_fallthru
          _
        // Predicated region
        $region25: #{tpu_custom_call.1} parent=11 // pred_check
          %p215 = pneg %p123
        $region26: #{tpu_custom_call.1} parent=11 // pred_check_branch
          %217 = sbr.rel (%p215) target = $region28
        $region27: #{tpu_custom_call.1} parent=11 // pred_region
          _
        $region28: #{tpu_custom_call.1} parent=11 // pred_fallthru
          _
        // Predicated region
        $region29: #{tpu_custom_call.1} parent=11 // pred_check
          %p218 = pneg %p144
        $region30: #{tpu_custom_call.1} parent=11 // pred_check_branch
          %220 = sbr.rel (%p218) target = $region32
        $region31: #{tpu_custom_call.1} parent=11 // pred_region
          _
        $region32: #{tpu_custom_call.1} parent=11 // pred_fallthru
          _
        // Predicated region
        $region33: #{tpu_custom_call.1} parent=11 // pred_check
          %p221 = pneg %p165
        $region34: #{tpu_custom_call.1} parent=11 // pred_check_branch
          %223 = sbr.rel (%p221) target = $region36
        $region35: #{tpu_custom_call.1} parent=11 // pred_region
          _
        $region36: #{tpu_custom_call.1} parent=11 // pred_fallthru
          _
      $region12: #{tpu_custom_call.1} parent=5 // pred_fallthru
        _
      %p224 = scmp.lt.s32.totalorder %s13, 2
      // Predicated region
      $region37: #{tpu_custom_call.1} parent=5 // pred_check
        %p225 = pneg %p224
      $region38: #{tpu_custom_call.1} parent=5 // pred_check_branch
        %227 = sbr.rel (%p225) target = $region40
      $region39: #{tpu_custom_call.1} parent=5 // pred_region
        // Predicated region
        $region41: #{tpu_custom_call.1} parent=39 // pred_check
          %p228 = pneg %p33
        $region42: #{tpu_custom_call.1} parent=39 // pred_check_branch
          %230 = sbr.rel (%p228) target = $region44
        $region43: #{tpu_custom_call.1} parent=39 // pred_region
          %s231 = smul.u32 17, %s13
          %s232 = ssub.s32 33, %s231
          %p233 = scmp.lt.s32.totalorder %s232, 17
          %s234 = scalar_select %p233, %s232, 17
          %s235 = smul.u32 128, %s234
          %p236 = scmp.lt.s32.totalorder %s231, 32
          %s237 = scalar_select %p236, %s231, 32
          %s238 = smul.addr %s237, 8
          %s239 = scalar_lea.vmem %s0, %s238
          %s240 = smul.u32 17, %s13
          %s241 = ssub.s32 33, %s240
          %p242 = scmp.lt.s32.totalorder %s241, 17
          %s243 = scalar_select %p242, %s241, 17
          %s244 = smul.u32 128, %s243
        $region44: #{tpu_custom_call.1} parent=39 // pred_fallthru
          _
      $region40: #{tpu_custom_call.1} parent=5 // pred_fallthru
        _
      %p245 = scmp.le.s32.totalorder 1, %s13
      %p246 = scmp.lt.s32.totalorder %s13, 3
      %p247 = pnand %p245, %p246
      %p248 = pneg %p247
      // Predicated region
      $region45: #{tpu_custom_call.1} parent=5 // pred_check
        _
      $region46: #{tpu_custom_call.1} parent=5 // pred_check_branch
        %250 = sbr.rel (%p247) target = $region48
      $region47: #{tpu_custom_call.1} parent=5 // pred_region
        %s251 = ssub.s32 %s13, 1
        %s252 = smul.u32 17, %s18
        %s253 = ssub.s32 33, %s252
        %p254 = scmp.lt.s32.totalorder %s253, 17
        %s255 = scalar_select %p254, %s253, 17
        %s256 = smul.u32 128, %s255
        %p257 = scmp.lt.s32.totalorder %s252, 32
        %s258 = scalar_select %p257, %s252, 32
        %s259 = smul.addr %s258, 8
        %s260 = scalar_lea.vmem %s0, %s259
        %p261 = pneg %p39
        %p262 = pneg %p36
        %p263 = pneg %p60
        %p264 = pneg %p57
        %p265 = pneg %p81
        %p266 = pneg %p78
        %p267 = pneg %p102
        %p268 = pneg %p99
        %p269 = pneg %p123
        %p270 = pneg %p120
        %p271 = pneg %p144
        %p272 = pneg %p141
        %p273 = pneg %p165
        %p274 = pneg %p162
        %p275 = pneg %p191
        %p276 = pneg %p188
        %s277 = sand.u32 %s178, 1
        %s278 = sand.u32 %s178, 1
        %s279 = smul.addr %s278, 136
        %s280 = scalar_lea.vmem [#allocation2], %s279
        %s281 = smul.u32 17, %s18
        %s282 = ssub.s32 33, %s281
        %p283 = scmp.lt.s32.totalorder %s282, 17
        %s284 = scalar_select %p283, %s282, 17
        %s285 = smul.u32 128, %s284
        %p286 = scmp.lt.s32.totalorder %s281, 32
        %s287 = scalar_select %p286, %s281, 32
        %s288 = smul.addr %s287, 8
        %s289 = scalar_lea.vmem %s0, %s288
        %s290 = smul.u32 17, %s18
        %s291 = ssub.s32 33, %s290
        %p292 = scmp.lt.s32.totalorder %s291, 17
        %s293 = scalar_select %p292, %s291, 17
        %s294 = smul.u32 128, %s293
        %s295 = smul.u32 17, %s18
        %s296 = ssub.s32 33, %s295
        %p297 = scmp.lt.s32.totalorder %s296, 17
        %s298 = scalar_select %p297, %s296, 17
        %s299 = smul.u32 128, %s298
        %v301 = vld [vmem:[%s289] sm:$0xff]
        %v302 = vld [vmem:[%s289 + $0x8] sm:$0xff]
        %v303 = vld [vmem:[%s289 + $0x10] sm:$0xff]
        %v304 = vld [vmem:[%s289 + $0x18] sm:$0xff]
        %v305 = vld [vmem:[%s289 + $0x20] sm:$0xff]
        %v306 = vld [vmem:[%s289 + $0x28] sm:$0xff]
        %v307 = vld [vmem:[%s289 + $0x30] sm:$0xff]
        %v308 = vld [vmem:[%s289 + $0x38] sm:$0xff]
        %v309 = vld [vmem:[%s289 + $0x40] sm:$0xff]
        %v310 = vld [vmem:[%s289 + $0x48] sm:$0xff]
        %v311 = vld [vmem:[%s289 + $0x50] sm:$0xff]
        %v312 = vld [vmem:[%s289 + $0x58] sm:$0xff]
        %v313 = vld [vmem:[%s289 + $0x60] sm:$0xff]
        %v314 = vld [vmem:[%s289 + $0x68] sm:$0xff]
        %v315 = vld [vmem:[%s289 + $0x70] sm:$0xff]
        %v316 = vld [vmem:[%s289 + $0x78] sm:$0xff]
        %v317 = vld [vmem:[%s289 + $0x80] sm:$0xff]
        %v318 = vpack.c.bf16 %v302, %v301
        %v319 = vpack.c.bf16 %v304, %v303
        %v320 = vpack.c.bf16 %v306, %v305
        %v321 = vpack.c.bf16 %v308, %v307
        %v322 = vpack.c.bf16 %v310, %v309
        %v323 = vpack.c.bf16 %v312, %v311
        %v324 = vpack.c.bf16 %v314, %v313
        %v325 = vpack.c.bf16 %v316, %v315
        %v326 = vpack.c.bf16 %v317, %v317
        %v327 = vld [vmem:[%s1] sm:$0xf]
        %v328 = vld [vmem:[%s1 + $0x4] sm:$0xf]
        %v329 = vld [vmem:[%s2] sm:$0x1]
        %v331 = vlaneseq
        %v332 = vshrl.u32 %v331, 7
        %v333 = vsub.s32 0, %v332
        %v334 = vrot.slane %v329, %v333
        %v338 = vunpack.c.l.b16 %v327
        %v339 = vunpack.c.l.b16 %v328
        %v340 = vpack.c.b16 %v339, %v338
        %vm342 = vcmask 130048
        %v344 = vsel %vm342, %v318, 0
        %v347 = vsel %vm342, %v319, 0
        %v350 = vsel %vm342, %v320, 0
        %v353 = vsel %vm342, %v321, 0
        %v356 = vsel %vm342, %v322, 0
        %v359 = vsel %vm342, %v323, 0
        %v362 = vsel %vm342, %v324, 0
        %v365 = vsel %vm342, %v325, 0
        %v368 = vsel %vm342, %v326, 0
        %370 = vmatprep.subr.bf16.mxu0 0
        %371 = vmatpush1.bf16.msra.mxu0 %v340
        %372 = vmatprep.subr.bf16.mxu0 0
        %373 = vmatpush1.bf16.msra.mxu0 0
        %374 = vmatprep.subr.bf16.mxu0 0
        %375 = vmatpush1.bf16.msra.mxu0 0
        %376 = vmatprep.subr.bf16.mxu0 0
        %377 = vmatpush1.bf16.msra.mxu0 0
        %378 = vmatprep.subr.bf16.mxu0 0
        %379 = vmatpush1.bf16.msra.mxu0 0
        %380 = vmatprep.subr.bf16.mxu0 0
        %381 = vmatpush1.bf16.msra.mxu0 0
        %382 = vmatprep.subr.bf16.mxu0 0
        %383 = vmatpush1.bf16.msra.mxu0 0
        %384 = vmatprep.subr.bf16.mxu0 0
        %385 = vmatpush1.bf16.msra.mxu0 0
        %386 = vmatprep.subr.bf16.mxu0 0
        %387 = vmatpush1.bf16.msra.mxu0 0
        %388 = vmatprep.subr.bf16.mxu0 0
        %389 = vmatpush1.bf16.msra.mxu0 0
        %390 = vmatprep.subr.bf16.mxu0 0
        %391 = vmatpush1.bf16.msra.mxu0 0
        %392 = vmatprep.subr.bf16.mxu0 0
        %393 = vmatpush1.bf16.msra.mxu0 0
        %394 = vmatprep.subr.bf16.mxu0 0
        %395 = vmatpush1.bf16.msra.mxu0 0
        %396 = vmatprep.subr.bf16.mxu0 0
        %397 = vmatpush1.bf16.msra.mxu0 0
        %398 = vmatprep.subr.bf16.mxu0 0
        %399 = vmatpush1.bf16.msra.mxu0 0
        %400 = vmatprep.subr.bf16.mxu0 0
        %401 = vmatpush1.bf16.msra.mxu0 0
        %402 = vmatprep.mubr.bf16.mxu0 0
        %403 = vmatmul.mubr.bf16.gmra.mrb[0].mxu0 %v344
        %v404 = vpop.f32.mrb[0].mxu0
        %v405 = vadd.f32 %v334, %v404
        %v406 = vpop.f32.mrb[0].mxu0
        %v407 = vpop.f32.mrb[0].mxu0
        %v408 = vadd.f32 %v334, %v407
        %v409 = vpop.f32.mrb[0].mxu0
        %410 = vmatprep.mubr.bf16.mxu0 0
        %411 = vmatmul.mubr.bf16.gmra.mrb[0].mxu0 %v347
        %v412 = vpop.f32.mrb[0].mxu0
        %v413 = vadd.f32 %v334, %v412
        %v414 = vpop.f32.mrb[0].mxu0
        %v415 = vpop.f32.mrb[0].mxu0
        %v416 = vadd.f32 %v334, %v415
        %v417 = vpop.f32.mrb[0].mxu0
        %418 = vmatprep.mubr.bf16.mxu0 0
        %419 = vmatmul.mubr.bf16.gmra.mrb[0].mxu0 %v350
        %v420 = vpop.f32.mrb[0].mxu0
        %v421 = vadd.f32 %v334, %v420
        %v422 = vpop.f32.mrb[0].mxu0
        %v423 = vpop.f32.mrb[0].mxu0
        %v424 = vadd.f32 %v334, %v423
        %v425 = vpop.f32.mrb[0].mxu0
        %426 = vmatprep.mubr.bf16.mxu0 0
        %427 = vmatmul.mubr.bf16.gmra.mrb[0].mxu0 %v353
        %v428 = vpop.f32.mrb[0].mxu0
        %v429 = vadd.f32 %v334, %v428
        %v430 = vpop.f32.mrb[0].mxu0
        %v431 = vpop.f32.mrb[0].mxu0
        %v432 = vadd.f32 %v334, %v431
        %v433 = vpop.f32.mrb[0].mxu0
        %434 = vmatprep.mubr.bf16.mxu0 0
        %435 = vmatmul.mubr.bf16.gmra.mrb[0].mxu0 %v356
        %v436 = vpop.f32.mrb[0].mxu0
        %v437 = vadd.f32 %v334, %v436
        %v438 = vpop.f32.mrb[0].mxu0
        %v439 = vpop.f32.mrb[0].mxu0
        %v440 = vadd.f32 %v334, %v439
        %v441 = vpop.f32.mrb[0].mxu0
        %442 = vmatprep.mubr.bf16.mxu0 0
        %443 = vmatmul.mubr.bf16.gmra.mrb[0].mxu0 %v359
        %v444 = vpop.f32.mrb[0].mxu0
        %v445 = vadd.f32 %v334, %v444
        %v446 = vpop.f32.mrb[0].mxu0
        %v447 = vpop.f32.mrb[0].mxu0
        %v448 = vadd.f32 %v334, %v447
        %v449 = vpop.f32.mrb[0].mxu0
        %450 = vmatprep.mubr.bf16.mxu0 0
        %451 = vmatmul.mubr.bf16.gmra.mrb[0].mxu0 %v362
        %v452 = vpop.f32.mrb[0].mxu0
        %v453 = vadd.f32 %v334, %v452
        %v454 = vpop.f32.mrb[0].mxu0
        %v455 = vpop.f32.mrb[0].mxu0
        %v456 = vadd.f32 %v334, %v455
        %v457 = vpop.f32.mrb[0].mxu0
        %458 = vmatprep.mubr.bf16.mxu0 0
        %459 = vmatmul.mubr.bf16.gmra.mrb[0].mxu0 %v365
        %v460 = vpop.f32.mrb[0].mxu0
        %v461 = vadd.f32 %v334, %v460
        %v462 = vpop.f32.mrb[0].mxu0
        %v463 = vpop.f32.mrb[0].mxu0
        %v464 = vadd.f32 %v334, %v463
        %v465 = vpop.f32.mrb[0].mxu0
        %466 = vmatprep.mubr.bf16.mxu0 0
        %467 = vmatmul.mubr.bf16.gmra.mrb[0].mxu0 %v368
        %v468 = vpop.f32.mrb[0].mxu0
        %v469 = vadd.f32 %v334, %v468
        %v470 = vpop.f32.mrb[0].mxu0
        %v471 = vpop.f32.mrb[0].mxu0
        %v472 = vpop.f32.mrb[0].mxu0
        %473 = vdwg.mxu0
        %v474 = vmax.f32 %v405, 0.0
        %v475 = vmax.f32 %v408, 0.0
        %v476 = vmax.f32 %v413, 0.0
        %v477 = vmax.f32 %v416, 0.0
        %v478 = vmax.f32 %v421, 0.0
        %v479 = vmax.f32 %v424, 0.0
        %v480 = vmax.f32 %v429, 0.0
        %v481 = vmax.f32 %v432, 0.0
        %v482 = vmax.f32 %v437, 0.0
        %v483 = vmax.f32 %v440, 0.0
        %v484 = vmax.f32 %v445, 0.0
        %v485 = vmax.f32 %v448, 0.0
        %v486 = vmax.f32 %v453, 0.0
        %v487 = vmax.f32 %v456, 0.0
        %v488 = vmax.f32 %v461, 0.0
        %v489 = vmax.f32 %v464, 0.0
        %v490 = vmax.f32 %v469, 0.0
        %v491 = vpack.c.bf16 %v475, %v474
        %v492 = vpack.c.bf16 %v477, %v476
        %v493 = vpack.c.bf16 %v479, %v478
        %v494 = vpack.c.bf16 %v481, %v480
        %v495 = vpack.c.bf16 %v483, %v482
        %v496 = vpack.c.bf16 %v485, %v484
        %v497 = vpack.c.bf16 %v487, %v486
        %v498 = vpack.c.bf16 %v489, %v488
        %v499 = vpack.c.bf16 %v490, %v490
        %v500 = vld [vmem:[%s3] sm:$0xf]
        %v501 = vld [vmem:[%s3 + $0x4] sm:$0xf]
        %v502 = vld [vmem:[%s3 + $0x8] sm:$0xf]
        %v503 = vld [vmem:[%s3 + $0xc] sm:$0xf]
        %v504 = vld [vmem:[%s3 + $0x10] sm:$0xf]
        %v505 = vld [vmem:[%s3 + $0x14] sm:$0xf]
        %v506 = vld [vmem:[%s3 + $0x18] sm:$0xf]
        %v507 = vld [vmem:[%s3 + $0x1c] sm:$0xf]
        %v508 = vld [vmem:[%s3 + $0x20] sm:$0xf]
        %v509 = vld [vmem:[%s3 + $0x24] sm:$0xf]
        %v510 = vld [vmem:[%s3 + $0x28] sm:$0xf]
        %v511 = vld [vmem:[%s3 + $0x2c] sm:$0xf]
        %v512 = vld [vmem:[%s3 + $0x30] sm:$0xf]
        %v513 = vld [vmem:[%s3 + $0x34] sm:$0xf]
        %v514 = vld [vmem:[%s3 + $0x38] sm:$0xf]
        %v515 = vld [vmem:[%s3 + $0x3c] sm:$0xf]
        %v516 = vld [vmem:[%s4] sm:$0x1]
        %v518 = vlaneseq
        %v519 = vshrl.u32 %v518, 7
        %v520 = vsub.s32 0, %v519
        %v521 = vrot.slane %v516, %v520
        %v539 = vunpack.c.l.b16 %v500
        %v540 = vunpack.c.l.b16 %v501
        %v541 = vunpack.c.l.b16 %v502
        %v542 = vunpack.c.l.b16 %v503
        %v543 = vunpack.c.l.b16 %v504
        %v544 = vunpack.c.l.b16 %v505
        %v545 = vunpack.c.l.b16 %v506
        %v546 = vunpack.c.l.b16 %v507
        %v547 = vunpack.c.l.b16 %v508
        %v548 = vunpack.c.l.b16 %v509
        %v549 = vunpack.c.l.b16 %v510
        %v550 = vunpack.c.l.b16 %v511
        %v551 = vunpack.c.l.b16 %v512
        %v552 = vunpack.c.l.b16 %v513
        %v553 = vunpack.c.l.b16 %v514
        %v554 = vunpack.c.l.b16 %v515
        %v555 = vpack.c.b16 %v540, %v539
        %v556 = vpack.c.b16 %v542, %v541
        %v557 = vpack.c.b16 %v544, %v543
        %v558 = vpack.c.b16 %v546, %v545
        %v559 = vpack.c.b16 %v548, %v547
        %v560 = vpack.c.b16 %v550, %v549
        %v561 = vpack.c.b16 %v552, %v551
        %v562 = vpack.c.b16 %v554, %v553
        %571 = vmatprep.subr.bf16.mxu0 0
        %572 = vmatpush1.bf16.msra.mxu0 %v555
        %573 = vmatprep.subr.bf16.mxu0 0
        %574 = vmatpush1.bf16.msra.mxu0 %v556
        %575 = vmatprep.subr.bf16.mxu0 0
        %576 = vmatpush1.bf16.msra.mxu0 %v557
        %577 = vmatprep.subr.bf16.mxu0 0
        %578 = vmatpush1.bf16.msra.mxu0 %v558
        %579 = vmatprep.subr.bf16.mxu0 0
        %580 = vmatpush1.bf16.msra.mxu0 %v559
        %581 = vmatprep.subr.bf16.mxu0 0
        %582 = vmatpush1.bf16.msra.mxu0 %v560
        %583 = vmatprep.subr.bf16.mxu0 0
        %584 = vmatpush1.bf16.msra.mxu0 %v561
        %585 = vmatprep.subr.bf16.mxu0 0
        %586 = vmatpush1.bf16.msra.mxu0 %v562
        %587 = vmatprep.subr.bf16.mxu0 0
        %588 = vmatpush1.bf16.msra.mxu0 0
        %589 = vmatprep.subr.bf16.mxu0 0
        %590 = vmatpush1.bf16.msra.mxu0 0
        %591 = vmatprep.subr.bf16.mxu0 0
        %592 = vmatpush1.bf16.msra.mxu0 0
        %593 = vmatprep.subr.bf16.mxu0 0
        %594 = vmatpush1.bf16.msra.mxu0 0
        %595 = vmatprep.subr.bf16.mxu0 0
        %596 = vmatpush1.bf16.msra.mxu0 0
        %597 = vmatprep.subr.bf16.mxu0 0
        %598 = vmatpush1.bf16.msra.mxu0 0
        %599 = vmatprep.subr.bf16.mxu0 0
        %600 = vmatpush1.bf16.msra.mxu0 0
        %601 = vmatprep.subr.bf16.mxu0 0
        %602 = vmatpush1.bf16.msra.mxu0 0
        %603 = vmatprep.mubr.bf16.mxu0 0
        %604 = vmatmul.mubr.bf16.gmra.mrb[0].mxu0 %v491
        %v605 = vpop.f32.mrb[0].mxu0
        %v606 = vadd.f32 %v521, %v605
        %v607 = vpop.f32.mrb[0].mxu0
        %v608 = vpop.f32.mrb[0].mxu0
        %v609 = vadd.f32 %v521, %v608
        %v610 = vpop.f32.mrb[0].mxu0
        %611 = vmatprep.mubr.bf16.mxu0 0
        %612 = vmatmul.mubr.bf16.gmra.mrb[0].mxu0 %v492
        %v613 = vpop.f32.mrb[0].mxu0
        %v614 = vadd.f32 %v521, %v613
        %v615 = vpop.f32.mrb[0].mxu0
        %v616 = vpop.f32.mrb[0].mxu0
        %v617 = vadd.f32 %v521, %v616
        %v618 = vpop.f32.mrb[0].mxu0
        %619 = vmatprep.mubr.bf16.mxu0 0
        %620 = vmatmul.mubr.bf16.gmra.mrb[0].mxu0 %v493
        %v621 = vpop.f32.mrb[0].mxu0
        %v622 = vadd.f32 %v521, %v621
        %v623 = vpop.f32.mrb[0].mxu0
        %v624 = vpop.f32.mrb[0].mxu0
        %v625 = vadd.f32 %v521, %v624
        %v626 = vpop.f32.mrb[0].mxu0
        %627 = vmatprep.mubr.bf16.mxu0 0
        %628 = vmatmul.mubr.bf16.gmra.mrb[0].mxu0 %v494
        %v629 = vpop.f32.mrb[0].mxu0
        %v630 = vadd.f32 %v521, %v629
        %v631 = vpop.f32.mrb[0].mxu0
        %v632 = vpop.f32.mrb[0].mxu0
        %v633 = vadd.f32 %v521, %v632
        %v634 = vpop.f32.mrb[0].mxu0
        %635 = vmatprep.mubr.bf16.mxu0 0
        %636 = vmatmul.mubr.bf16.gmra.mrb[0].mxu0 %v495
        %v637 = vpop.f32.mrb[0].mxu0
        %v638 = vadd.f32 %v521, %v637
        %v639 = vpop.f32.mrb[0].mxu0
        %v640 = vpop.f32.mrb[0].mxu0
        %v641 = vadd.f32 %v521, %v640
        %v642 = vpop.f32.mrb[0].mxu0
        %643 = vmatprep.mubr.bf16.mxu0 0
        %644 = vmatmul.mubr.bf16.gmra.mrb[0].mxu0 %v496
        %v645 = vpop.f32.mrb[0].mxu0
        %v646 = vadd.f32 %v521, %v645
        %v647 = vpop.f32.mrb[0].mxu0
        %v648 = vpop.f32.mrb[0].mxu0
        %v649 = vadd.f32 %v521, %v648
        %v650 = vpop.f32.mrb[0].mxu0
        %651 = vmatprep.mubr.bf16.mxu0 0
        %652 = vmatmul.mubr.bf16.gmra.mrb[0].mxu0 %v497
        %v653 = vpop.f32.mrb[0].mxu0
        %v654 = vadd.f32 %v521, %v653
        %v655 = vpop.f32.mrb[0].mxu0
        %v656 = vpop.f32.mrb[0].mxu0
        %v657 = vadd.f32 %v521, %v656
        %v658 = vpop.f32.mrb[0].mxu0
        %659 = vmatprep.mubr.bf16.mxu0 0
        %660 = vmatmul.mubr.bf16.gmra.mrb[0].mxu0 %v498
        %v661 = vpop.f32.mrb[0].mxu0
        %v662 = vadd.f32 %v521, %v661
        %v663 = vpop.f32.mrb[0].mxu0
        %v664 = vpop.f32.mrb[0].mxu0
        %v665 = vadd.f32 %v521, %v664
        %v666 = vpop.f32.mrb[0].mxu0
        %667 = vmatprep.mubr.bf16.mxu0 0
        %668 = vmatmul.mubr.bf16.gmra.mrb[0].mxu0 %v499
        %v669 = vpop.f32.mrb[0].mxu0
        %v670 = vadd.f32 %v521, %v669
        %v671 = vpop.f32.mrb[0].mxu0
        %v672 = vpop.f32.mrb[0].mxu0
        %v673 = vpop.f32.mrb[0].mxu0
        %674 = vdwg.mxu0
        %v675 = vmax.f32 %v606, 0.0
        %v676 = vmax.f32 %v609, 0.0
        %v677 = vmax.f32 %v614, 0.0
        %v678 = vmax.f32 %v617, 0.0
        %v679 = vmax.f32 %v622, 0.0
        %v680 = vmax.f32 %v625, 0.0
        %v681 = vmax.f32 %v630, 0.0
        %v682 = vmax.f32 %v633, 0.0
        %v683 = vmax.f32 %v638, 0.0
        %v684 = vmax.f32 %v641, 0.0
        %v685 = vmax.f32 %v646, 0.0
        %v686 = vmax.f32 %v649, 0.0
        %v687 = vmax.f32 %v654, 0.0
        %v688 = vmax.f32 %v657, 0.0
        %v689 = vmax.f32 %v662, 0.0
        %v690 = vmax.f32 %v665, 0.0
        %v691 = vmax.f32 %v670, 0.0
        %v692 = vpack.c.bf16 %v676, %v675
        %v693 = vpack.c.bf16 %v678, %v677
        %v694 = vpack.c.bf16 %v680, %v679
        %v695 = vpack.c.bf16 %v682, %v681
        %v696 = vpack.c.bf16 %v684, %v683
        %v697 = vpack.c.bf16 %v686, %v685
        %v698 = vpack.c.bf16 %v688, %v687
        %v699 = vpack.c.bf16 %v690, %v689
        %v700 = vpack.c.bf16 %v691, %v691
        %v701 = vld [vmem:[%s5] sm:$0xf]
        %v702 = vld [vmem:[%s5 + $0x4] sm:$0xf]
        %v703 = vld [vmem:[%s5 + $0x8] sm:$0xf]
        %v704 = vld [vmem:[%s5 + $0xc] sm:$0xf]
        %v705 = vld [vmem:[%s5 + $0x10] sm:$0xf]
        %v706 = vld [vmem:[%s5 + $0x14] sm:$0xf]
        %v707 = vld [vmem:[%s5 + $0x18] sm:$0xf]
        %v708 = vld [vmem:[%s5 + $0x1c] sm:$0xf]
        %v709 = vld [vmem:[%s6] sm:$0x1]
        %v711 = vlaneseq
        %v712 = vshrl.u32 %v711, 7
        %v713 = vsub.s32 0, %v712
        %v714 = vrot.slane %v709, %v713
        %v724 = vunpack.c.l.b16 %v701
        %v725 = vunpack.c.l.b16 %v702
        %v726 = vunpack.c.l.b16 %v703
        %v727 = vunpack.c.l.b16 %v704
        %v728 = vunpack.c.l.b16 %v705
        %v729 = vunpack.c.l.b16 %v706
        %v730 = vunpack.c.l.b16 %v707
        %v731 = vunpack.c.l.b16 %v708
        %v732 = vpack.c.b16 %v725, %v724
        %v733 = vpack.c.b16 %v727, %v726
        %v734 = vpack.c.b16 %v729, %v728
        %v735 = vpack.c.b16 %v731, %v730
        %vm740 = vcmask 523264
        %v742 = vsel %vm740, %v692, 0
        %v745 = vsel %vm740, %v693, 0
        %v748 = vsel %vm740, %v694, 0
        %v751 = vsel %vm740, %v695, 0
        %v754 = vsel %vm740, %v696, 0
        %v757 = vsel %vm740, %v697, 0
        %v760 = vsel %vm740, %v698, 0
        %v763 = vsel %vm740, %v699, 0
        %v766 = vsel %vm740, %v700, 0
        %768 = vmatprep.subr.bf16.mxu0 0
        %769 = vmatpush1.bf16.msra.mxu0 %v732
        %770 = vmatprep.subr.bf16.mxu0 0
        %771 = vmatpush1.bf16.msra.mxu0 %v733
        %772 = vmatprep.subr.bf16.mxu0 0
        %773 = vmatpush1.bf16.msra.mxu0 %v734
        %774 = vmatprep.subr.bf16.mxu0 0
        %775 = vmatpush1.bf16.msra.mxu0 %v735
        %776 = vmatprep.subr.bf16.mxu0 0
        %777 = vmatpush1.bf16.msra.mxu0 0
        %778 = vmatprep.subr.bf16.mxu0 0
        %779 = vmatpush1.bf16.msra.mxu0 0
        %780 = vmatprep.subr.bf16.mxu0 0
        %781 = vmatpush1.bf16.msra.mxu0 0
        %782 = vmatprep.subr.bf16.mxu0 0
        %783 = vmatpush1.bf16.msra.mxu0 0
        %784 = vmatprep.subr.bf16.mxu0 0
        %785 = vmatpush1.bf16.msra.mxu0 0
        %786 = vmatprep.subr.bf16.mxu0 0
        %787 = vmatpush1.bf16.msra.mxu0 0
        %788 = vmatprep.subr.bf16.mxu0 0
        %789 = vmatpush1.bf16.msra.mxu0 0
        %790 = vmatprep.subr.bf16.mxu0 0
        %791 = vmatpush1.bf16.msra.mxu0 0
        %792 = vmatprep.subr.bf16.mxu0 0
        %793 = vmatpush1.bf16.msra.mxu0 0
        %794 = vmatprep.subr.bf16.mxu0 0
        %795 = vmatpush1.bf16.msra.mxu0 0
        %796 = vmatprep.subr.bf16.mxu0 0
        %797 = vmatpush1.bf16.msra.mxu0 0
        %798 = vmatprep.subr.bf16.mxu0 0
        %799 = vmatpush1.bf16.msra.mxu0 0
        %800 = vmatprep.mubr.bf16.mxu0 0
        %801 = vmatmul.mubr.bf16.gmra.mrb[0].mxu0 %v742
        %v802 = vpop.f32.mrb[0].mxu0
        %v803 = vadd.f32 %v714, %v802
        %v804 = vpop.f32.mrb[0].mxu0
        %v805 = vpop.f32.mrb[0].mxu0
        %v806 = vadd.f32 %v714, %v805
        %v807 = vpop.f32.mrb[0].mxu0
        %808 = vmatprep.mubr.bf16.mxu0 0
        %809 = vmatmul.mubr.bf16.gmra.mrb[0].mxu0 %v745
        %v810 = vpop.f32.mrb[0].mxu0
        %v811 = vadd.f32 %v714, %v810
        %v812 = vpop.f32.mrb[0].mxu0
        %v813 = vpop.f32.mrb[0].mxu0
        %v814 = vadd.f32 %v714, %v813
        %v815 = vpop.f32.mrb[0].mxu0
        %816 = vmatprep.mubr.bf16.mxu0 0
        %817 = vmatmul.mubr.bf16.gmra.mrb[0].mxu0 %v748
        %v818 = vpop.f32.mrb[0].mxu0
        %v819 = vadd.f32 %v714, %v818
        %v820 = vpop.f32.mrb[0].mxu0
        %v821 = vpop.f32.mrb[0].mxu0
        %v822 = vadd.f32 %v714, %v821
        %v823 = vpop.f32.mrb[0].mxu0
        %824 = vmatprep.mubr.bf16.mxu0 0
        %825 = vmatmul.mubr.bf16.gmra.mrb[0].mxu0 %v751
        %v826 = vpop.f32.mrb[0].mxu0
        %v827 = vadd.f32 %v714, %v826
        %v828 = vpop.f32.mrb[0].mxu0
        %v829 = vpop.f32.mrb[0].mxu0
        %v830 = vadd.f32 %v714, %v829
        %v831 = vpop.f32.mrb[0].mxu0
        %832 = vmatprep.mubr.bf16.mxu0 0
        %833 = vmatmul.mubr.bf16.gmra.mrb[0].mxu0 %v754
        %v834 = vpop.f32.mrb[0].mxu0
        %v835 = vadd.f32 %v714, %v834
        %v836 = vpop.f32.mrb[0].mxu0
        %v837 = vpop.f32.mrb[0].mxu0
        %v838 = vadd.f32 %v714, %v837
        %v839 = vpop.f32.mrb[0].mxu0
        %840 = vmatprep.mubr.bf16.mxu0 0
        %841 = vmatmul.mubr.bf16.gmra.mrb[0].mxu0 %v757
        %v842 = vpop.f32.mrb[0].mxu0
        %v843 = vadd.f32 %v714, %v842
        %v844 = vpop.f32.mrb[0].mxu0
        %v845 = vpop.f32.mrb[0].mxu0
        %v846 = vadd.f32 %v714, %v845
        %v847 = vpop.f32.mrb[0].mxu0
        %848 = vmatprep.mubr.bf16.mxu0 0
        %849 = vmatmul.mubr.bf16.gmra.mrb[0].mxu0 %v760
        %v850 = vpop.f32.mrb[0].mxu0
        %v851 = vadd.f32 %v714, %v850
        %v852 = vpop.f32.mrb[0].mxu0
        %v853 = vpop.f32.mrb[0].mxu0
        %v854 = vadd.f32 %v714, %v853
        %v855 = vpop.f32.mrb[0].mxu0
        %856 = vmatprep.mubr.bf16.mxu0 0
        %857 = vmatmul.mubr.bf16.gmra.mrb[0].mxu0 %v763
        %v858 = vpop.f32.mrb[0].mxu0
        %v859 = vadd.f32 %v714, %v858
        %v860 = vpop.f32.mrb[0].mxu0
        %v861 = vpop.f32.mrb[0].mxu0
        %v862 = vadd.f32 %v714, %v861
        %v863 = vpop.f32.mrb[0].mxu0
        %864 = vmatprep.mubr.bf16.mxu0 0
        %865 = vmatmul.mubr.bf16.gmra.mrb[0].mxu0 %v766
        %v866 = vpop.f32.mrb[0].mxu0
        %v867 = vadd.f32 %v714, %v866
        %v868 = vpop.f32.mrb[0].mxu0
        %v869 = vpop.f32.mrb[0].mxu0
        %v870 = vpop.f32.mrb[0].mxu0
        %871 = vdwg.mxu0
        %vm872 = vcmask 31744
        %873 = vst.msk [vmem:[%s280] sm:$0xff] %vm872, %v803
        %874 = vst.msk [vmem:[%s280 + $0x8] sm:$0xff] %vm872, %v806
        %875 = vst.msk [vmem:[%s280 + $0x10] sm:$0xff] %vm872, %v811
        %876 = vst.msk [vmem:[%s280 + $0x18] sm:$0xff] %vm872, %v814
        %877 = vst.msk [vmem:[%s280 + $0x20] sm:$0xff] %vm872, %v819
        %878 = vst.msk [vmem:[%s280 + $0x28] sm:$0xff] %vm872, %v822
        %879 = vst.msk [vmem:[%s280 + $0x30] sm:$0xff] %vm872, %v827
        %880 = vst.msk [vmem:[%s280 + $0x38] sm:$0xff] %vm872, %v830
        %881 = vst.msk [vmem:[%s280 + $0x40] sm:$0xff] %vm872, %v835
        %882 = vst.msk [vmem:[%s280 + $0x48] sm:$0xff] %vm872, %v838
        %883 = vst.msk [vmem:[%s280 + $0x50] sm:$0xff] %vm872, %v843
        %884 = vst.msk [vmem:[%s280 + $0x58] sm:$0xff] %vm872, %v846
        %885 = vst.msk [vmem:[%s280 + $0x60] sm:$0xff] %vm872, %v851
        %886 = vst.msk [vmem:[%s280 + $0x68] sm:$0xff] %vm872, %v854
        %887 = vst.msk [vmem:[%s280 + $0x70] sm:$0xff] %vm872, %v859
        %888 = vst.msk [vmem:[%s280 + $0x78] sm:$0xff] %vm872, %v862
        %889 = vst.msk [vmem:[%s280 + $0x80] sm:$0xff] %vm872, %v867
        %s890 = sand.u32 %s178, 1
        %s891 = sand.u32 %s178, 1
        %s892 = smul.addr %s891, 136
        %s893 = scalar_lea.vmem [#allocation2], %s892
        // Predicated region
        $region49: #{tpu_custom_call.1} parent=47 // pred_check
          %p894 = pneg %p188
        $region50: #{tpu_custom_call.1} parent=47 // pred_check_branch
          %896 = sbr.rel (%p894) target = $region52
        $region51: #{tpu_custom_call.1} parent=47 // pred_region
          %s897 = smul.u32 17, %s18
          %s898 = ssub.s32 33, %s897
          %p899 = scmp.lt.s32.totalorder %s898, 17
          %s900 = scalar_select %p899, %s898, 17
          %s901 = smul.u32 128, %s900
          %p902 = scmp.ne.s32.totalorder 0, %s901
          %s903 = smul.addr %s897, 8
          %s904 = scalar_lea.vmem %s7, %s903
          // Predicated region
          $region53: #{tpu_custom_call.1} parent=51 // pred_check
            %p905 = pneg %p902
          $region54: #{tpu_custom_call.1} parent=51 // pred_check_branch
            %907 = sbr.rel (%p905) target = $region56
          $region55: #{tpu_custom_call.1} parent=51 // pred_region
            // Predicated region
            $region57: #{tpu_custom_call.1} parent=55 // pred_check
              _
            $region58: #{tpu_custom_call.1} parent=55 // pred_check_branch
              %909 = sbr.rel (0) target = $region60
            $region59: #{tpu_custom_call.1} parent=55 // pred_region
              // Predicated region
              $region79: #{tpu_custom_call.1} parent=59 // pred_check
                _
              $region80: #{tpu_custom_call.1} parent=59 // pred_check_branch
                %991 = sbr.rel (0) target = $region82
              $region81: #{tpu_custom_call.1} parent=59 // pred_region
                %s992 = sdiv.u32.pop %s900, 17
                %s993 = srem.u32.pop %s900, 17
                // While loop
                $region83: #{tpu_custom_call.1} parent=81 // loop_pre_header
                  _
                $region84: #{tpu_custom_call.1} parent=81 // loop_header
                  %s995 = sphi 0, %s997
                  %p996 = scmp.ge.s32.totalorder %s995, %s992
                  %s1000 = sphi 0, %s1039
                  %s1001 = sphi %s893, %s1042
                  %s1002 = sphi %s904, %s1043
                $region85: #{tpu_custom_call.1} parent=81 // loop_header_branch
                  %999 = sbr.rel (%p996) target = $region89
                $region86: #{tpu_custom_call.1} parent=81 // loop_body
                  %v1003 = vld [vmem:[%s1001] sm:$0xff]
                  %1004 = vst [vmem:[%s1002] sm:$0xff] %v1003
                  %v1005 = vld [vmem:[%s1001 + $0x8] sm:$0xff]
                  %1006 = vst [vmem:[%s1002 + $0x8] sm:$0xff] %v1005
                  %v1007 = vld [vmem:[%s1001 + $0x10] sm:$0xff]
                  %1008 = vst [vmem:[%s1002 + $0x10] sm:$0xff] %v1007
                  %v1009 = vld [vmem:[%s1001 + $0x18] sm:$0xff]
                  %1010 = vst [vmem:[%s1002 + $0x18] sm:$0xff] %v1009
                  %v1011 = vld [vmem:[%s1001 + $0x20] sm:$0xff]
                  %1012 = vst [vmem:[%s1002 + $0x20] sm:$0xff] %v1011
                  %v1013 = vld [vmem:[%s1001 + $0x28] sm:$0xff]
                  %1014 = vst [vmem:[%s1002 + $0x28] sm:$0xff] %v1013
                  %v1015 = vld [vmem:[%s1001 + $0x30] sm:$0xff]
                  %1016 = vst [vmem:[%s1002 + $0x30] sm:$0xff] %v1015
                  %v1017 = vld [vmem:[%s1001 + $0x38] sm:$0xff]
                  %1018 = vst [vmem:[%s1002 + $0x38] sm:$0xff] %v1017
                  %v1019 = vld [vmem:[%s1001 + $0x40] sm:$0xff]
                  %1020 = vst [vmem:[%s1002 + $0x40] sm:$0xff] %v1019
                  %v1021 = vld [vmem:[%s1001 + $0x48] sm:$0xff]
                  %1022 = vst [vmem:[%s1002 + $0x48] sm:$0xff] %v1021
                  %v1023 = vld [vmem:[%s1001 + $0x50] sm:$0xff]
                  %1024 = vst [vmem:[%s1002 + $0x50] sm:$0xff] %v1023
                  %v1025 = vld [vmem:[%s1001 + $0x58] sm:$0xff]
                  %1026 = vst [vmem:[%s1002 + $0x58] sm:$0xff] %v1025
                  %v1027 = vld [vmem:[%s1001 + $0x60] sm:$0xff]
                  %1028 = vst [vmem:[%s1002 + $0x60] sm:$0xff] %v1027
                  %v1029 = vld [vmem:[%s1001 + $0x68] sm:$0xff]
                  %1030 = vst [vmem:[%s1002 + $0x68] sm:$0xff] %v1029
                  %v1031 = vld [vmem:[%s1001 + $0x70] sm:$0xff]
                  %1032 = vst [vmem:[%s1002 + $0x70] sm:$0xff] %v1031
                  %v1033 = vld [vmem:[%s1001 + $0x78] sm:$0xff]
                  %1034 = vst [vmem:[%s1002 + $0x78] sm:$0xff] %v1033
                  %v1035 = vld [vmem:[%s1001 + $0x80] sm:$0xff]
                  %1036 = vst [vmem:[%s1002 + $0x80] sm:$0xff] %v1035
                  %s1037 = sadd.s32 1, %s1000
                  %p1038 = scmp.ge.s32.totalorder %s1037, %s992
                  %s1039 = scalar_select %p1038, 0, %s1037
                  %s1040 = smul.u32 %s1039, 136
                  %s1041 = smul.u32 %s1039, 136
                  %s1042 = scalar_lea.vmem %s893, %s1040 [#allocation2]
                  %s1043 = scalar_lea.vmem %s904, %s1041
                $region87: #{tpu_custom_call.1} parent=81 // loop_footer
                  %s997 = sadd.s32 %s995, 1
                $region88: #{tpu_custom_call.1} parent=81 // loop_footer_branch
                  %994 = sbr.rel target = $region84
                $region89: #{tpu_custom_call.1} parent=81 // loop_exit
                  _
                %s1044 = sdiv.u32.pop %s900, 17
                %s1045 = srem.u32.pop %s900, 17
                %s1046 = smul.u32 %s1044, 17
                %s1047 = smul.u32 8, %s1046
                %s1048 = scalar_lea.vmem %s893, %s1047 [#allocation2]
                %s1049 = smul.u32 8, %s1046
                %s1050 = scalar_lea.vmem %s904, %s1049
                // While loop
                $region90: #{tpu_custom_call.1} parent=81 // loop_pre_header
                  _
                $region91: #{tpu_custom_call.1} parent=81 // loop_header
                  %s1052 = sphi 0, %s1054
                  %p1053 = scmp.ge.s32.totalorder %s1052, %s1045
                  %s1057 = sphi 0, %s1064
                  %s1058 = sphi %s1048, %s1067
                  %s1059 = sphi %s1050, %s1068
                $region92: #{tpu_custom_call.1} parent=81 // loop_header_branch
                  %1056 = sbr.rel (%p1053) target = $region96
                $region93: #{tpu_custom_call.1} parent=81 // loop_body
                  %v1060 = vld [vmem:[%s1058] sm:$0xff]
                  %1061 = vst [vmem:[%s1059] sm:$0xff] %v1060
                  %s1062 = sadd.s32 1, %s1057
                  %p1063 = scmp.ge.s32.totalorder %s1062, %s1045
                  %s1064 = scalar_select %p1063, 0, %s1062
                  %s1065 = smul.u32 %s1064, 8
                  %s1066 = smul.u32 %s1064, 8
                  %s1067 = scalar_lea.vmem %s1048, %s1065 [#allocation2]
                  %s1068 = scalar_lea.vmem %s1050, %s1066
                $region94: #{tpu_custom_call.1} parent=81 // loop_footer
                  %s1054 = sadd.s32 %s1052, 1
                $region95: #{tpu_custom_call.1} parent=81 // loop_footer_branch
                  %1051 = sbr.rel target = $region91
                $region96: #{tpu_custom_call.1} parent=81 // loop_exit
                  _
              $region82: #{tpu_custom_call.1} parent=59 // pred_fallthru
                _
              // Predicated region
              $region97: #{tpu_custom_call.1} parent=59 // pred_check
                _
              $region98: #{tpu_custom_call.1} parent=59 // pred_check_branch
                %1070 = sbr.rel target = $region100
              $region99: #{tpu_custom_call.1} parent=59 // pred_region
                _
              $region100: #{tpu_custom_call.1} parent=59 // pred_fallthru
                _
            $region60: #{tpu_custom_call.1} parent=55 // pred_fallthru
              _
            // Predicated region
            $region61: #{tpu_custom_call.1} parent=55 // pred_check
              _
            $region62: #{tpu_custom_call.1} parent=55 // pred_check_branch
              %911 = sbr.rel target = $region64
            $region63: #{tpu_custom_call.1} parent=55 // pred_region
              %s913 = sdiv.u32.pop %s900, 17
              %s914 = srem.u32.pop %s900, 17
              // While loop
              $region65: #{tpu_custom_call.1} parent=63 // loop_pre_header
                _
              $region66: #{tpu_custom_call.1} parent=63 // loop_header
                %s916 = sphi 0, %s918
                %p917 = scmp.ge.s32.totalorder %s916, %s913
                %s921 = sphi 0, %s960
                %s922 = sphi %s893, %s963
                %s923 = sphi %s904, %s964
              $region67: #{tpu_custom_call.1} parent=63 // loop_header_branch
                %920 = sbr.rel (%p917) target = $region71
              $region68: #{tpu_custom_call.1} parent=63 // loop_body
                %v924 = vld [vmem:[%s922] sm:$0xff]
                %925 = vst [vmem:[%s923] sm:$0xff] %v924
                %v926 = vld [vmem:[%s922 + $0x8] sm:$0xff]
                %927 = vst [vmem:[%s923 + $0x8] sm:$0xff] %v926
                %v928 = vld [vmem:[%s922 + $0x10] sm:$0xff]
                %929 = vst [vmem:[%s923 + $0x10] sm:$0xff] %v928
                %v930 = vld [vmem:[%s922 + $0x18] sm:$0xff]
                %931 = vst [vmem:[%s923 + $0x18] sm:$0xff] %v930
                %v932 = vld [vmem:[%s922 + $0x20] sm:$0xff]
                %933 = vst [vmem:[%s923 + $0x20] sm:$0xff] %v932
                %v934 = vld [vmem:[%s922 + $0x28] sm:$0xff]
                %935 = vst [vmem:[%s923 + $0x28] sm:$0xff] %v934
                %v936 = vld [vmem:[%s922 + $0x30] sm:$0xff]
                %937 = vst [vmem:[%s923 + $0x30] sm:$0xff] %v936
                %v938 = vld [vmem:[%s922 + $0x38] sm:$0xff]
                %939 = vst [vmem:[%s923 + $0x38] sm:$0xff] %v938
                %v940 = vld [vmem:[%s922 + $0x40] sm:$0xff]
                %941 = vst [vmem:[%s923 + $0x40] sm:$0xff] %v940
                %v942 = vld [vmem:[%s922 + $0x48] sm:$0xff]
                %943 = vst [vmem:[%s923 + $0x48] sm:$0xff] %v942
                %v944 = vld [vmem:[%s922 + $0x50] sm:$0xff]
                %945 = vst [vmem:[%s923 + $0x50] sm:$0xff] %v944
                %v946 = vld [vmem:[%s922 + $0x58] sm:$0xff]
                %947 = vst [vmem:[%s923 + $0x58] sm:$0xff] %v946
                %v948 = vld [vmem:[%s922 + $0x60] sm:$0xff]
                %949 = vst [vmem:[%s923 + $0x60] sm:$0xff] %v948
                %v950 = vld [vmem:[%s922 + $0x68] sm:$0xff]
                %951 = vst [vmem:[%s923 + $0x68] sm:$0xff] %v950
                %v952 = vld [vmem:[%s922 + $0x70] sm:$0xff]
                %953 = vst [vmem:[%s923 + $0x70] sm:$0xff] %v952
                %v954 = vld [vmem:[%s922 + $0x78] sm:$0xff]
                %955 = vst [vmem:[%s923 + $0x78] sm:$0xff] %v954
                %v956 = vld [vmem:[%s922 + $0x80] sm:$0xff]
                %957 = vst [vmem:[%s923 + $0x80] sm:$0xff] %v956
                %s958 = sadd.s32 1, %s921
                %p959 = scmp.ge.s32.totalorder %s958, %s913
                %s960 = scalar_select %p959, 0, %s958
                %s961 = smul.u32 %s960, 136
                %s962 = smul.u32 %s960, 136
                %s963 = scalar_lea.vmem %s893, %s961 [#allocation2]
                %s964 = scalar_lea.vmem %s904, %s962
              $region69: #{tpu_custom_call.1} parent=63 // loop_footer
                %s918 = sadd.s32 %s916, 1
              $region70: #{tpu_custom_call.1} parent=63 // loop_footer_branch
                %915 = sbr.rel target = $region66
              $region71: #{tpu_custom_call.1} parent=63 // loop_exit
                _
              %s965 = sdiv.u32.pop %s900, 17
              %s966 = srem.u32.pop %s900, 17
              %s967 = smul.u32 %s965, 17
              %s968 = smul.u32 8, %s967
              %s969 = scalar_lea.vmem %s893, %s968 [#allocation2]
              %s970 = smul.u32 8, %s967
              %s971 = scalar_lea.vmem %s904, %s970
              // While loop
              $region72: #{tpu_custom_call.1} parent=63 // loop_pre_header
                _
              $region73: #{tpu_custom_call.1} parent=63 // loop_header
                %s973 = sphi 0, %s975
                %p974 = scmp.ge.s32.totalorder %s973, %s966
                %s978 = sphi 0, %s985
                %s979 = sphi %s969, %s988
                %s980 = sphi %s971, %s989
              $region74: #{tpu_custom_call.1} parent=63 // loop_header_branch
                %977 = sbr.rel (%p974) target = $region78
              $region75: #{tpu_custom_call.1} parent=63 // loop_body
                %v981 = vld [vmem:[%s979] sm:$0xff]
                %982 = vst [vmem:[%s980] sm:$0xff] %v981
                %s983 = sadd.s32 1, %s978
                %p984 = scmp.ge.s32.totalorder %s983, %s966
                %s985 = scalar_select %p984, 0, %s983
                %s986 = smul.u32 %s985, 8
                %s987 = smul.u32 %s985, 8
                %s988 = scalar_lea.vmem %s969, %s986 [#allocation2]
                %s989 = scalar_lea.vmem %s971, %s987
              $region76: #{tpu_custom_call.1} parent=63 // loop_footer
                %s975 = sadd.s32 %s973, 1
              $region77: #{tpu_custom_call.1} parent=63 // loop_footer_branch
                %972 = sbr.rel target = $region73
              $region78: #{tpu_custom_call.1} parent=63 // loop_exit
                _
            $region64: #{tpu_custom_call.1} parent=55 // pred_fallthru
              _
          $region56: #{tpu_custom_call.1} parent=51 // pred_fallthru
            _
          %1071 = vnop
        $region52: #{tpu_custom_call.1} parent=47 // pred_fallthru
          _
      $region48: #{tpu_custom_call.1} parent=5 // pred_fallthru
        _
      %p1072 = scmp.le.s32.totalorder 2, %s13
      // Predicated region
      $region101: #{tpu_custom_call.1} parent=5 // pred_check
        %p1073 = pneg %p1072
      $region102: #{tpu_custom_call.1} parent=5 // pred_check_branch
        %1075 = sbr.rel (%p1073) target = $region104
      $region103: #{tpu_custom_call.1} parent=5 // pred_region
        %s1076 = ssub.s32 %s13, 2
        // Predicated region
        $region105: #{tpu_custom_call.1} parent=103 // pred_check
          %p1077 = pneg %p194
        $region106: #{tpu_custom_call.1} parent=103 // pred_check_branch
          %1079 = sbr.rel (%p1077) target = $region108
        $region107: #{tpu_custom_call.1} parent=103 // pred_region
          %s1080 = sand.u32 %s179, 1
          %s1081 = sand.u32 %s179, 1
          %s1082 = smul.addr %s1081, 136
          %s1083 = scalar_lea.vmem [#allocation2], %s1082
        $region108: #{tpu_custom_call.1} parent=103 // pred_fallthru
          _
      $region104: #{tpu_custom_call.1} parent=5 // pred_fallthru
        _
    $region6: #{tpu_custom_call.1} parent=1 // loop_footer
      %s17 = sadd.s32 1, %s13
    $region7: #{tpu_custom_call.1} parent=1 // loop_footer_branch
      %12 = sbr.rel target = $region3
    $region8: #{tpu_custom_call.1} parent=1 // loop_exit
      _

</llo_original>
